<compile_context>
chip_gen: v5e
topology: v5e:2x2
jax: 0.10.0
libtpu: 0.0.40
codegen_flags: <defaults>
</compile_context>

<pallas_src>
import functools

import jax
import jax.numpy as jnp
from jax.experimental import pallas as pl
from jax.experimental.pallas import tpu as pltpu


# -----------------------------------------------------------------------------
# Pallas kernel (single fused forward)
# -----------------------------------------------------------------------------

def _vmem():
    return pl.BlockSpec(memory_space=pltpu.MemorySpace.VMEM)


def mtl_influencer_kernel(x_ref,
                          ew1_ref, eb1_ref, ew2_ref, eb2_ref, ew3_ref, eb3_ref,
                          emb_ref, w_ih_ref, b_ih_ref, b_hh_ref,
                          w_lin_ref, b_lin_ref,
                          head_ref, *, hidden_size, output_size):
    H = hidden_size
    SB = head_ref.shape[0]  # 32, fixed by torch.zeros(size=[32, 1]) in the ref

    # ---- encoder: 3x (Linear + ReLU) -----------------------------------------
    # Faithful to the reference: `encoded` is produced, cast to int and then
    # NEVER consumed by the decoder (the reference calls self.gru(output) with
    # the default h0 = 0).  Kept in the fused kernel for structural fidelity;
    # since nothing downstream uses it the compiler removes it at zero cost.
    h_enc = jnp.maximum(
        jnp.dot(x_ref[...], ew1_ref[...], preferred_element_type=jnp.float32)
        + eb1_ref[...], 0.0)
    h_enc = jnp.maximum(
        jnp.dot(h_enc, ew2_ref[...], preferred_element_type=jnp.float32)
        + eb2_ref[...], 0.0)
    h_enc = jnp.maximum(
        jnp.dot(h_enc, ew3_ref[...], preferred_element_type=jnp.float32)
        + eb3_ref[...], 0.0)
    # (torch `.type(torch.LongTensor)` truncation would follow here; the value
    #  is discarded in the reference forward, so it is not materialized.)
    del h_enc

    # ---- decoder: Embedding(0) -> one GRU step (h0 = 0) ----------------------
    # Embedding of an all-zero index tensor == row 0 broadcast over the batch.
    x = jnp.broadcast_to(emb_ref[0:1, :], (SB, H))

    # Input-side gates, PyTorch gate order (r, z, n): x @ W_ih + b_ih.
    gi = jnp.dot(x, w_ih_ref[...], preferred_element_type=jnp.float32) \
        + b_ih_ref[...]

    # Hidden-side gates with h0 == 0 reduce to the hidden biases.  Keep them as
    # (1, H) rows and rely on implicit broadcasting (no (32, 3H) broadcast).
    b_hr = b_hh_ref[:, 0:H]
    b_hz = b_hh_ref[:, H:2 * H]
    b_hn = b_hh_ref[:, 2 * H:3 * H]

    r = jax.nn.sigmoid(gi[:, 0:H] + b_hr)
    z = jax.nn.sigmoid(gi[:, H:2 * H] + b_hz)
    n = jnp.tanh(gi[:, 2 * H:3 * H] + r * b_hn)
    h = (1.0 - z) * n  # + z * h0, with h0 = 0

    # ---- Linear head + LogSoftmax(dim=1) -------------------------------------
    w_lin = w_lin_ref[...]  # (output_size, H), PyTorch (out, in) layout
    if output_size == 1:
        # N=1 matmul -> VPU multiply + row reduction (skip the MXU entirely).
        logits = jnp.sum(h * w_lin, axis=1, keepdims=True) + b_lin_ref[...]
    else:
        logits = jax.lax.dot_general(
            h, w_lin, (((1,), (1,)), ((), ())),
            preferred_element_type=jnp.float32) + b_lin_ref[...]

    # NOTE: for output_size == 1, LogSoftmax over dim=1 is identically zero;
    # the general path is kept (negligible cost inside this single call) so the
    # kernel remains correct for output_size > 1 configurations.
    m = jnp.max(logits, axis=1, keepdims=True)
    lse = m + jnp.log(jnp.sum(jnp.exp(logits - m), axis=1, keepdims=True))
    head_ref[...] = logits - lse


# -----------------------------------------------------------------------------
# Wrapper
# -----------------------------------------------------------------------------

def mtl_influencer_forward(x, p, decoder_hidden_size, output_size):
    x = x.astype(jnp.float32)
    seq_batch = 32  # fixed decoder batch from torch.zeros(size=[32, 1])

    head = pl.pallas_call(
        functools.partial(mtl_influencer_kernel,
                          hidden_size=decoder_hidden_size,
                          output_size=output_size),
        out_shape=jax.ShapeDtypeStruct((seq_batch, output_size), jnp.float32),
        in_specs=[_vmem()] * 13,
        out_specs=_vmem(),
    )(x,
      p["enc_w1"], p["enc_b1"], p["enc_w2"], p["enc_b2"],
      p["enc_w3"], p["enc_b3"],
      p["dec_emb"], p["dec_w_ih"], p["dec_b_ih"], p["dec_b_hh"],
      p["dec_w_lin"], p["dec_b_lin"])

    # The three reference decoder calls are bit-identical (same zero input,
    # `encoded` ignored, h0 = 0), so compute once and return the head thrice.
    return head, head, head


# -----------------------------------------------------------------------------
# Deterministic parameter construction
# -----------------------------------------------------------------------------

def init_params(key, input_size, enc_hidden, enc_out, dec_hidden, output_size):
    ks = jax.random.split(key, 9)
    s = 0.1

    def w(k, shape):
        return (s * jax.random.normal(k, shape)).astype(jnp.float32)

    return {
        # Encoder MLP (Linear weights stored as (in, out)).
        "enc_w1": w(ks[0], (input_size, enc_hidden)),
        "enc_b1": w(ks[1], (1, enc_hidden)),
        "enc_w2": w(ks[2], (enc_hidden, enc_hidden)),
        "enc_b2": w(ks[3], (1, enc_hidden)),
        "enc_w3": w(ks[4], (enc_hidden, enc_out)),
        "enc_b3": w(ks[5], (1, enc_out)),
        # Decoder: Embedding(enc_out, dec_hidden).
        "dec_emb": w(ks[6], (enc_out, dec_hidden)),
        # GRU params, gate order (r, z, n); input weight stored as (in, 3*H).
        # Biases are zero per the reference init_weights().
        "dec_w_ih": w(ks[7], (dec_hidden, 3 * dec_hidden)),
        "dec_b_ih": jnp.zeros((1, 3 * dec_hidden), jnp.float32),
        "dec_b_hh": jnp.zeros((1, 3 * dec_hidden), jnp.float32),
        # Head Linear(dec_hidden -> output_size), PyTorch (out, in) layout;
        # bias zero per init_weights().
        "dec_w_lin": w(ks[8], (output_size, dec_hidden)),
        "dec_b_lin": jnp.zeros((1, output_size), jnp.float32),
    }


# -----------------------------------------------------------------------------
# Main
# -----------------------------------------------------------------------------

if __name__ == "__main__":
    input_size = 8
    encoder_hidden_size = 32
    encoder_output_size = 16
    decoder_hidden_size = 32
    output_size = 1  # required by the reference `.view(output_size, 32, -1)`
    batch = 4

    key = jax.random.PRNGKey(0)
    k_x, k_p = jax.random.split(key)
    x = jax.random.normal(k_x, (batch, input_size), dtype=jnp.float32)
    params = init_params(k_p, input_size, encoder_hidden_size,
                         encoder_output_size, decoder_hidden_size, output_size)

    fwd = jax.jit(functools.partial(mtl_influencer_forward,
                                    decoder_hidden_size=decoder_hidden_size,
                                    output_size=output_size))
    accept, revenue, reputation = fwd(x, params)
    jax.block_until_ready((accept, revenue, reputation))

    assert accept.shape == (32, output_size)
    assert revenue.shape == (32, output_size)
    assert reputation.shape == (32, output_size)
    print("KERNEL_OK")
</pallas_src>

<mosaic_0001>
module attributes {stable_mosaic.version = 11 : i64} {
  func.func @mtl_influencer_kernel(%arg0: memref<4x8xf32, #tpu.memory_space<vmem>>, %arg1: memref<8x32xf32, #tpu.memory_space<vmem>>, %arg2: memref<1x32xf32, #tpu.memory_space<vmem>>, %arg3: memref<32x32xf32, #tpu.memory_space<vmem>>, %arg4: memref<1x32xf32, #tpu.memory_space<vmem>>, %arg5: memref<32x16xf32, #tpu.memory_space<vmem>>, %arg6: memref<1x16xf32, #tpu.memory_space<vmem>>, %arg7: memref<16x32xf32, #tpu.memory_space<vmem>>, %arg8: memref<32x96xf32, #tpu.memory_space<vmem>>, %arg9: memref<1x96xf32, #tpu.memory_space<vmem>>, %arg10: memref<1x96xf32, #tpu.memory_space<vmem>>, %arg11: memref<1x32xf32, #tpu.memory_space<vmem>>, %arg12: memref<1x1xf32, #tpu.memory_space<vmem>>, %arg13: memref<32x1xf32, #tpu.memory_space<vmem>>) attributes {dimension_semantics = [], scalar_prefetch = 0 : i64, scratch_operands = 0 : i64, tpu.core_type = #tpu.core_type<tc>} {
    %c0 = arith.constant 0 : index
    %c0_0 = arith.constant 0 : index
    %0 = vector.load %arg7[%c0, %c0_0] : memref<16x32xf32, #tpu.memory_space<vmem>>, vector<1x32xf32>
    %1 = vector.shape_cast %0 : vector<1x32xf32> to vector<1x32xf32>
    %2 = vector.broadcast %1 : vector<1x32xf32> to vector<32x32xf32>
    %c0_1 = arith.constant 0 : index
    %c0_2 = arith.constant 0 : index
    %3 = vector.load %arg8[%c0_1, %c0_2] : memref<32x96xf32, #tpu.memory_space<vmem>>, vector<32x96xf32>
    %cst = arith.constant dense<0.000000e+00> : vector<32x96xf32>
    %4 = tpu.matmul %2, %3, %cst {dimension_numbers = #tpu.dot_dimension_numbers<[1], [0], [0], [1], [0, 0, 1, 1], [], []>} : vector<32x32xf32>, vector<32x96xf32>, vector<32x96xf32> -> vector<32x96xf32>
    %c0_3 = arith.constant 0 : index
    %c0_4 = arith.constant 0 : index
    %5 = vector.load %arg9[%c0_3, %c0_4] : memref<1x96xf32, #tpu.memory_space<vmem>>, vector<1x96xf32>
    %6 = vector.broadcast %5 : vector<1x96xf32> to vector<32x96xf32>
    %7 = arith.addf %4, %6 : vector<32x96xf32>
    %c0_5 = arith.constant 0 : index
    %c0_6 = arith.constant 0 : index
    %8 = vector.load %arg10[%c0_5, %c0_6] : memref<1x96xf32, #tpu.memory_space<vmem>>, vector<1x32xf32>
    %c0_7 = arith.constant 0 : index
    %c32 = arith.constant 32 : index
    %9 = vector.load %arg10[%c0_7, %c32] : memref<1x96xf32, #tpu.memory_space<vmem>>, vector<1x32xf32>
    %c0_8 = arith.constant 0 : index
    %c64 = arith.constant 64 : index
    %10 = vector.load %arg10[%c0_8, %c64] : memref<1x96xf32, #tpu.memory_space<vmem>>, vector<1x32xf32>
    %11 = vector.extract_strided_slice %7 {offsets = [0, 0], sizes = [32, 32], strides = [1, 1]} : vector<32x96xf32> to vector<32x32xf32>
    %12 = vector.broadcast %8 : vector<1x32xf32> to vector<32x32xf32>
    %13 = arith.addf %11, %12 : vector<32x32xf32>
    %14 = arith.negf %13 : vector<32x32xf32>
    %15 = math.exp %14 : vector<32x32xf32>
    %cst_9 = arith.constant 1.000000e+00 : f32
    %16 = vector.broadcast %cst_9 : f32 to vector<32x32xf32>
    %17 = arith.addf %16, %15 : vector<32x32xf32>
    %18 = arith.divf %16, %17 : vector<32x32xf32>
    %19 = vector.extract_strided_slice %7 {offsets = [0, 32], sizes = [32, 32], strides = [1, 1]} : vector<32x96xf32> to vector<32x32xf32>
    %20 = vector.broadcast %9 : vector<1x32xf32> to vector<32x32xf32>
    %21 = arith.addf %19, %20 : vector<32x32xf32>
    %22 = arith.negf %21 : vector<32x32xf32>
    %23 = math.exp %22 : vector<32x32xf32>
    %cst_10 = arith.constant 1.000000e+00 : f32
    %24 = vector.broadcast %cst_10 : f32 to vector<32x32xf32>
    %25 = arith.addf %24, %23 : vector<32x32xf32>
    %26 = arith.divf %24, %25 : vector<32x32xf32>
    %27 = vector.extract_strided_slice %7 {offsets = [0, 64], sizes = [32, 32], strides = [1, 1]} : vector<32x96xf32> to vector<32x32xf32>
    %28 = vector.broadcast %10 : vector<1x32xf32> to vector<32x32xf32>
    %29 = arith.mulf %18, %28 : vector<32x32xf32>
    %30 = arith.addf %27, %29 : vector<32x32xf32>
    %31 = math.tanh %30 : vector<32x32xf32>
    %cst_11 = arith.constant 1.000000e+00 : f32
    %32 = vector.broadcast %cst_11 : f32 to vector<32x32xf32>
    %33 = arith.subf %32, %26 : vector<32x32xf32>
    %34 = arith.mulf %33, %31 : vector<32x32xf32>
    %c0_12 = arith.constant 0 : index
    %c0_13 = arith.constant 0 : index
    %35 = vector.load %arg11[%c0_12, %c0_13] : memref<1x32xf32, #tpu.memory_space<vmem>>, vector<1x32xf32>
    %36 = vector.broadcast %35 : vector<1x32xf32> to vector<32x32xf32>
    %37 = arith.mulf %34, %36 : vector<32x32xf32>
    %cst_14 = arith.constant dense<0.000000e+00> : vector<32xf32>
    %38 = vector.multi_reduction <add>, %37, %cst_14 [1] : vector<32x32xf32> to vector<32xf32>
    %39 = vector.shape_cast %38 : vector<32xf32> to vector<32x1xf32>
    %c0_15 = arith.constant 0 : index
    %c0_16 = arith.constant 0 : index
    %40 = vector.load %arg12[%c0_15, %c0_16] : memref<1x1xf32, #tpu.memory_space<vmem>>, vector<1x1xf32>
    %41 = vector.broadcast %40 : vector<1x1xf32> to vector<32x1xf32>
    %42 = arith.addf %39, %41 : vector<32x1xf32>
    %cst_17 = arith.constant dense<0xFF800000> : vector<32xf32>
    %43 = vector.multi_reduction <maximumf>, %42, %cst_17 [1] : vector<32x1xf32> to vector<32xf32>
    %44 = vector.shape_cast %43 : vector<32xf32> to vector<32x1xf32>
    %45 = arith.subf %42, %44 : vector<32x1xf32>
    %46 = math.exp %45 : vector<32x1xf32>
    %cst_18 = arith.constant dense<0.000000e+00> : vector<32xf32>
    %47 = vector.multi_reduction <add>, %46, %cst_18 [1] : vector<32x1xf32> to vector<32xf32>
    %48 = vector.shape_cast %47 : vector<32xf32> to vector<32x1xf32>
    %49 = math.log %48 : vector<32x1xf32>
    %50 = arith.addf %44, %49 : vector<32x1xf32>
    %51 = arith.subf %42, %50 : vector<32x1xf32>
    %c0_19 = arith.constant 0 : index
    %c0_20 = arith.constant 0 : index
    %52 = vector.load %arg13[%c0_19, %c0_20] : memref<32x1xf32, #tpu.memory_space<vmem>>, vector<32x1xf32>
    tpu.vector_store %arg13[%c0_19, %c0_20], %51 {strides = array<i32>} : memref<32x1xf32, #tpu.memory_space<vmem>>, vector<32x1xf32>,
    return
  }
}

</mosaic_0001>

<llo_original>
// kernel: mtl_influencer_forward.1
$region0: #{mtl_influencer_forward.1}
  #allocation0 [shape = 'u32[]', space=smem, size = 0x4, offset = 0x4, fixed_abs, tag = 'smem constant byte address 0x4 - core index']
  #allocation1 [shape = 'u32[72,128]{1,0:T(1,128)}', space=vmem, size = 0x9000, scoped, tag = 'internal scratch']
  #allocation2 [shape = 'f32[1,1]{1,0:T(1,128)S(1)}', space=vmem, size = 0x200, scoped, tag = 'scoped memory for mtl_influencer_forward.1']
  %s0 = inlined_call_operand.hbm [shape: f32[4,8], index: 0, kind: input, shape index: {}]
  %s1 = inlined_call_operand.vmem [shape: f32[8,32], index: 1, kind: input, shape index: {}]
  %s2 = inlined_call_operand.vmem [shape: f32[1,32], index: 2, kind: input, shape index: {}]
  %s3 = inlined_call_operand.vmem [shape: f32[32,32], index: 3, kind: input, shape index: {}]
  %s4 = inlined_call_operand.vmem [shape: f32[1,32], index: 4, kind: input, shape index: {}]
  %s5 = inlined_call_operand.vmem [shape: f32[32,16], index: 5, kind: input, shape index: {}]
  %s6 = inlined_call_operand.vmem [shape: f32[1,16], index: 6, kind: input, shape index: {}]
  %s7 = inlined_call_operand.vmem [shape: f32[16,32], index: 7, kind: input, shape index: {}]
  %s8 = inlined_call_operand.hbm [shape: f32[32,96], index: 8, kind: input, shape index: {}]
  %s9 = inlined_call_operand.hbm [shape: f32[1,96], index: 9, kind: input, shape index: {}]
  %s10 = inlined_call_operand.hbm [shape: f32[1,96], index: 10, kind: input, shape index: {}]
  %s11 = inlined_call_operand.hbm [shape: f32[1,32], index: 11, kind: input, shape index: {}]
  %s12 = inlined_call_operand.<no memory space> [shape: f32[1,1], index: 12, kind: input, shape index: {}]
  %s13 = inlined_call_operand.vmem [shape: f32[32,1], index: 13, kind: output, shape index: {}]
  %s14 = sld [smem:[#allocation0]]
  $region82: #{mtl_influencer_forward.1} parent=0
    _
  %s16 = ssub.s32 1, %s14
  %s17 = scalar_select 0, %s16, %s14
  %v18 = vstv %s12
  %19 = vst [vmem:[#allocation2] sm:$0x1] %v18
  $region1: #{mtl_influencer_forward.1} parent=0
    #allocation3 [shape = 'u8[2048]{0}', space=vmem, size = 0x800, scoped, tag = 'input window, operand 0, single buffered']
    #allocation4 [shape = 's32[1]{0}', space=sflag, size = 0x4, scoped, tag = 'scoped memory for mtl_influencer_forward.1']
    #allocation5 [shape = 'u8[16384]{0}', space=vmem, size = 0x4000, scoped, tag = 'input window, operand 8, single buffered']
    #allocation6 [shape = 's32[1]{0}', space=sflag, size = 0x4, scoped, tag = 'scoped memory for mtl_influencer_forward.1']
    #allocation7 [shape = 'u8[512]{0}', space=vmem, size = 0x400, scoped, tag = 'input window, operand 9, single buffered']
    #allocation8 [shape = 'u8[512]{0}', space=vmem, size = 0x400, scoped, tag = 'input window, operand 10, single buffered']
    #allocation9 [shape = 's32[1]{0}', space=sflag, size = 0x4, scoped, tag = 'scoped memory for mtl_influencer_forward.1']
    #allocation10 [shape = 'u8[512]{0}', space=vmem, size = 0x400, scoped, tag = 'input window, operand 11, single buffered']
    %20 = vsyncpa [#allocation4], 0
    %21 = vsyncpa [#allocation6], 0
    %22 = vsyncpa [#allocation9], 0
    // Predicated region
    $region2: #{mtl_influencer_forward.1} parent=1 // pred_check
      _
    $region3: #{mtl_influencer_forward.1} parent=1 // pred_check_branch
      %24 = sbr.rel (0) target = $region5
    $region4: #{mtl_influencer_forward.1} parent=1 // pred_region
      %26 = vsyncadd [#allocation4], 0
      %s28 = sshll.u32 %s0, 4
      %s29 = int_to_ptr.hbm [resolvable:$true] %s28
      %s30 = sshll.u32 [#allocation3], 4
      %s31 = int_to_ptr.vmem [resolvable:$true] %s30
      %33 = dma.hbm_to_vmem [thread:$0]  %s29, 64, %s31, [#allocation4]
    $region5: #{mtl_influencer_forward.1} parent=1 // pred_fallthru
      _
    // Predicated region
    $region6: #{mtl_influencer_forward.1} parent=1 // pred_check
      _
    $region7: #{mtl_influencer_forward.1} parent=1 // pred_check_branch
      %35 = sbr.rel (0) target = $region9
    $region8: #{mtl_influencer_forward.1} parent=1 // pred_region
      _
    $region9: #{mtl_influencer_forward.1} parent=1 // pred_fallthru
      _
    // Predicated region
    $region10: #{mtl_influencer_forward.1} parent=1 // pred_check
      _
    $region11: #{mtl_influencer_forward.1} parent=1 // pred_check_branch
      %37 = sbr.rel (0) target = $region13
    $region12: #{mtl_influencer_forward.1} parent=1 // pred_region
      _
    $region13: #{mtl_influencer_forward.1} parent=1 // pred_fallthru
      _
    // Predicated region
    $region14: #{mtl_influencer_forward.1} parent=1 // pred_check
      _
    $region15: #{mtl_influencer_forward.1} parent=1 // pred_check_branch
      %39 = sbr.rel (0) target = $region17
    $region16: #{mtl_influencer_forward.1} parent=1 // pred_region
      _
    $region17: #{mtl_influencer_forward.1} parent=1 // pred_fallthru
      _
    // Predicated region
    $region18: #{mtl_influencer_forward.1} parent=1 // pred_check
      _
    $region19: #{mtl_influencer_forward.1} parent=1 // pred_check_branch
      %41 = sbr.rel (0) target = $region21
    $region20: #{mtl_influencer_forward.1} parent=1 // pred_region
      _
    $region21: #{mtl_influencer_forward.1} parent=1 // pred_fallthru
      _
    // Predicated region
    $region22: #{mtl_influencer_forward.1} parent=1 // pred_check
      _
    $region23: #{mtl_influencer_forward.1} parent=1 // pred_check_branch
      %43 = sbr.rel (0) target = $region25
    $region24: #{mtl_influencer_forward.1} parent=1 // pred_region
      _
    $region25: #{mtl_influencer_forward.1} parent=1 // pred_fallthru
      _
    // Predicated region
    $region26: #{mtl_influencer_forward.1} parent=1 // pred_check
      _
    $region27: #{mtl_influencer_forward.1} parent=1 // pred_check_branch
      %45 = sbr.rel (0) target = $region29
    $region28: #{mtl_influencer_forward.1} parent=1 // pred_region
      _
    $region29: #{mtl_influencer_forward.1} parent=1 // pred_fallthru
      _
    // Predicated region
    $region30: #{mtl_influencer_forward.1} parent=1 // pred_check
      _
    $region31: #{mtl_influencer_forward.1} parent=1 // pred_check_branch
      %47 = sbr.rel (0) target = $region33
    $region32: #{mtl_influencer_forward.1} parent=1 // pred_region
      _
    $region33: #{mtl_influencer_forward.1} parent=1 // pred_fallthru
      _
    // Predicated region
    $region34: #{mtl_influencer_forward.1} parent=1 // pred_check
      _
    $region35: #{mtl_influencer_forward.1} parent=1 // pred_check_branch
      %49 = sbr.rel (0) target = $region37
    $region36: #{mtl_influencer_forward.1} parent=1 // pred_region
      %51 = vsyncadd [#allocation6], 0
      %s52 = sshll.u32 %s8, 4
      %s53 = int_to_ptr.hbm [resolvable:$true] %s52
      %s54 = sshll.u32 [#allocation5], 4
      %s55 = int_to_ptr.vmem [resolvable:$true] %s54
      %60 = dma.hbm_to_vmem [thread:$0]  %s53, 512, %s55, [#allocation6], 128, 128, 8
    $region37: #{mtl_influencer_forward.1} parent=1 // pred_fallthru
      _
    // Predicated region
    $region38: #{mtl_influencer_forward.1} parent=1 // pred_check
      _
    $region39: #{mtl_influencer_forward.1} parent=1 // pred_check_branch
      %62 = sbr.rel (0) target = $region41
    $region40: #{mtl_influencer_forward.1} parent=1 // pred_region
      %64 = vsyncadd [#allocation6], 0
      %s66 = sshll.u32 %s9, 4
      %s67 = int_to_ptr.hbm [resolvable:$true] %s66
      %s68 = sshll.u32 [#allocation7], 4
      %s69 = int_to_ptr.vmem [resolvable:$true] %s68
      %71 = dma.hbm_to_vmem [thread:$0]  %s67, 16, %s69, [#allocation6]
    $region41: #{mtl_influencer_forward.1} parent=1 // pred_fallthru
      _
    // Predicated region
    $region42: #{mtl_influencer_forward.1} parent=1 // pred_check
      _
    $region43: #{mtl_influencer_forward.1} parent=1 // pred_check_branch
      %73 = sbr.rel (0) target = $region45
    $region44: #{mtl_influencer_forward.1} parent=1 // pred_region
      %75 = vsyncadd [#allocation9], 0
      %s77 = sshll.u32 %s10, 4
      %s78 = int_to_ptr.hbm [resolvable:$true] %s77
      %s79 = sshll.u32 [#allocation8], 4
      %s80 = int_to_ptr.vmem [resolvable:$true] %s79
      %82 = dma.hbm_to_vmem [thread:$0]  %s78, 16, %s80, [#allocation9]
    $region45: #{mtl_influencer_forward.1} parent=1 // pred_fallthru
      _
    // Predicated region
    $region46: #{mtl_influencer_forward.1} parent=1 // pred_check
      _
    $region47: #{mtl_influencer_forward.1} parent=1 // pred_check_branch
      %84 = sbr.rel (0) target = $region49
    $region48: #{mtl_influencer_forward.1} parent=1 // pred_region
      %86 = vsyncadd [#allocation9], 0
      %s88 = sshll.u32 %s11, 4
      %s89 = int_to_ptr.hbm [resolvable:$true] %s88
      %s90 = sshll.u32 [#allocation10], 4
      %s91 = int_to_ptr.vmem [resolvable:$true] %s90
      %93 = dma.hbm_to_vmem [thread:$0]  %s89, 16, %s91, [#allocation9]
    $region49: #{mtl_influencer_forward.1} parent=1 // pred_fallthru
      _
    // Predicated region
    $region50: #{mtl_influencer_forward.1} parent=1 // pred_check
      _
    $region51: #{mtl_influencer_forward.1} parent=1 // pred_check_branch
      %95 = sbr.rel (0) target = $region53
    $region52: #{mtl_influencer_forward.1} parent=1 // pred_region
      _
    $region53: #{mtl_influencer_forward.1} parent=1 // pred_fallthru
      _
    // Predicated region
    $region54: #{mtl_influencer_forward.1} parent=1 // pred_check
      _
    $region55: #{mtl_influencer_forward.1} parent=1 // pred_check_branch
      %97 = sbr.rel (0) target = $region57
    $region56: #{mtl_influencer_forward.1} parent=1 // pred_region
      %99 = dma.done [#allocation4], 64
    $region57: #{mtl_influencer_forward.1} parent=1 // pred_fallthru
      _
    // Predicated region
    $region58: #{mtl_influencer_forward.1} parent=1 // pred_check
      _
    $region59: #{mtl_influencer_forward.1} parent=1 // pred_check_branch
      %101 = sbr.rel (0) target = $region61
    $region60: #{mtl_influencer_forward.1} parent=1 // pred_region
      %103 = dma.done [#allocation6], 512
    $region61: #{mtl_influencer_forward.1} parent=1 // pred_fallthru
      _
    // Predicated region
    $region62: #{mtl_influencer_forward.1} parent=1 // pred_check
      _
    $region63: #{mtl_influencer_forward.1} parent=1 // pred_check_branch
      %105 = sbr.rel (0) target = $region65
    $region64: #{mtl_influencer_forward.1} parent=1 // pred_region
      %107 = dma.done [#allocation6], 16
    $region65: #{mtl_influencer_forward.1} parent=1 // pred_fallthru
      _
    // Predicated region
    $region66: #{mtl_influencer_forward.1} parent=1 // pred_check
      _
    $region67: #{mtl_influencer_forward.1} parent=1 // pred_check_branch
      %109 = sbr.rel (0) target = $region69
    $region68: #{mtl_influencer_forward.1} parent=1 // pred_region
      %111 = dma.done [#allocation9], 16
    $region69: #{mtl_influencer_forward.1} parent=1 // pred_fallthru
      _
    // Predicated region
    $region70: #{mtl_influencer_forward.1} parent=1 // pred_check
      _
    $region71: #{mtl_influencer_forward.1} parent=1 // pred_check_branch
      %113 = sbr.rel (0) target = $region73
    $region72: #{mtl_influencer_forward.1} parent=1 // pred_region
      %115 = dma.done [#allocation9], 16
    $region73: #{mtl_influencer_forward.1} parent=1 // pred_fallthru
      _
    %v116 = vld [vmem:[%s7] sm:$0x1]
    %v117 = vperm.slane %v116, 0
    %v118 = vld [vmem:[#allocation5] sm:$0xff]
    %v119 = vld [vmem:[#allocation5 + $0x8] sm:$0xff]
    %v120 = vld [vmem:[#allocation5 + $0x10] sm:$0xff]
    %v121 = vld [vmem:[#allocation5 + $0x18] sm:$0xff]
    %v122 = vld [vmem:[#allocation7] sm:$0x1]
    %v124 = vperm.slane %v122, 0
    %vm127 = vcmask 261120
    %v128 = vsel %vm127, %v117, 0
    %130 = vmatpush.msra.mxu0 0.0
    %131 = vmatpush.msra.mxu0 0.0
    %132 = vmatpush.msra.mxu0 0.0
    %133 = vmatpush.msra.mxu0 0.0
    %134 = vmatpush.msra.mxu0 0.0
    %135 = vmatpush.msra.mxu0 0.0
    %136 = vmatpush.msra.mxu0 0.0
    %137 = vmatpush.msra.mxu0 0.0
    %138 = vmatpush.msra.mxu0 0.0
    %139 = vmatpush.msra.mxu0 0.0
    %140 = vmatpush.msra.mxu0 0.0
    %141 = vmatpush.msra.mxu0 0.0
    %142 = vmatpush.msra.mxu0 %v121
    %143 = vmatpush.msra.mxu0 %v120
    %144 = vmatpush.msra.mxu0 %v119
    %145 = vmatpush.msra.mxu0 %v118
    %146 = vmatmul.f32.gmra.mxu0 %v128
    %v147 = vpop.f32.mrf.mxu0
    %v148 = vadd.f32 %v124, %v147
    %149 = vmatmul.f32.gmra.mxu0 %v128
    %v150 = vpop.f32.mrf.mxu0
    %v151 = vadd.f32 %v124, %v150
    %152 = vmatmul.f32.gmra.mxu0 %v128
    %v153 = vpop.f32.mrf.mxu0
    %v154 = vadd.f32 %v124, %v153
    %155 = vmatmul.f32.gmra.mxu0 %v128
    %v156 = vpop.f32.mrf.mxu0
    %v157 = vadd.f32 %v124, %v156
    %158 = vdwg.mxu0
    %v159 = vld [vmem:[#allocation8] sm:$0x1]
    %v161 = vperm.slane %v159, 0
    %v163 = vadd.f32 %v148, %v161
    %v164 = vadd.f32 %v151, %v161
    %v165 = vadd.f32 %v154, %v161
    %v166 = vadd.f32 %v157, %v161
    %v167 = vxor.u32 %v163, 2147483648
    %v168 = vxor.u32 %v164, 2147483648
    %v169 = vxor.u32 %v165, 2147483648
    %v170 = vxor.u32 %v166, 2147483648
    %v171 = vmul.f32 %v167, 1.442695
    %v172 = vpow.pop %v171
    %v173 = vmul.f32 %v168, 1.442695
    %v174 = vpow.pop %v173
    %v175 = vmul.f32 %v169, 1.442695
    %v176 = vpow.pop %v175
    %v177 = vmul.f32 %v170, 1.442695
    %v178 = vpow.pop %v177
    %v179 = vadd.f32 %v172, 1.0
    %v180 = vadd.f32 %v174, 1.0
    %v181 = vadd.f32 %v176, 1.0
    %v182 = vadd.f32 %v178, 1.0
    %v183 = vrcp.pop %v179
    %v184 = vmul.f32 %v179, %v183
    %v185 = vsub.f32 1.0, %v184
    %v186 = vmul.f32 %v183, %v185
    %v187 = vadd.f32 %v183, %v186
    %vm188 = vweird.f32 %v179
    %vm189 = vweird.f32 %v183
    %vm190 = vmor %vm188, %vm189
    %v191 = vsel %vm190, %v183, %v187
    %v192 = vand.u32 2147483647, %v179
    %vm193 = vcmp.eq.f32.partialorder %v192, 8.507059e+37
    %v194 = vand.u32 %v179, 2147483648
    %v195 = vor.u32 1.1754944e-38, %v194
    %v196 = vsel %vm193, %v195, %v191
    %v197 = vmul.f32 1.0, %v196
    %v198 = vrcp.pop %v180
    %v199 = vmul.f32 %v180, %v198
    %v200 = vsub.f32 1.0, %v199
    %v201 = vmul.f32 %v198, %v200
    %v202 = vadd.f32 %v198, %v201
    %vm203 = vweird.f32 %v180
    %vm204 = vweird.f32 %v198
    %vm205 = vmor %vm203, %vm204
    %v206 = vsel %vm205, %v198, %v202
    %v207 = vand.u32 2147483647, %v180
    %vm208 = vcmp.eq.f32.partialorder %v207, 8.507059e+37
    %v209 = vand.u32 %v180, 2147483648
    %v210 = vor.u32 1.1754944e-38, %v209
    %v211 = vsel %vm208, %v210, %v206
    %v212 = vmul.f32 1.0, %v211
    %v213 = vrcp.pop %v181
    %v214 = vmul.f32 %v181, %v213
    %v215 = vsub.f32 1.0, %v214
    %v216 = vmul.f32 %v213, %v215
    %v217 = vadd.f32 %v213, %v216
    %vm218 = vweird.f32 %v181
    %vm219 = vweird.f32 %v213
    %vm220 = vmor %vm218, %vm219
    %v221 = vsel %vm220, %v213, %v217
    %v222 = vand.u32 2147483647, %v181
    %vm223 = vcmp.eq.f32.partialorder %v222, 8.507059e+37
    %v224 = vand.u32 %v181, 2147483648
    %v225 = vor.u32 1.1754944e-38, %v224
    %v226 = vsel %vm223, %v225, %v221
    %v227 = vmul.f32 1.0, %v226
    %v228 = vrcp.pop %v182
    %v229 = vmul.f32 %v182, %v228
    %v230 = vsub.f32 1.0, %v229
    %v231 = vmul.f32 %v228, %v230
    %v232 = vadd.f32 %v228, %v231
    %vm233 = vweird.f32 %v182
    %vm234 = vweird.f32 %v228
    %vm235 = vmor %vm233, %vm234
    %v236 = vsel %vm235, %v228, %v232
    %v237 = vand.u32 2147483647, %v182
    %vm238 = vcmp.eq.f32.partialorder %v237, 8.507059e+37
    %v239 = vand.u32 %v182, 2147483648
    %v240 = vor.u32 1.1754944e-38, %v239
    %v241 = vsel %vm238, %v240, %v236
    %v242 = vmul.f32 1.0, %v241
    %243 = vrot.lane.b32.xlu0 %v161, 64
    %v244 = vpop.permute.xlu0 %243
    %v246 = vmul.f32 %v197, %v244
    %v247 = vmul.f32 %v212, %v244
    %v248 = vmul.f32 %v227, %v244
    %v249 = vmul.f32 %v242, %v244
    %254 = vrot.lane.b32.xlu0 %v246, 64
    %v255 = vpop.permute.xlu0 %254
    %256 = vrot.lane.b32.xlu0 %v247, 64
    %v257 = vpop.permute.xlu0 %256
    %258 = vrot.lane.b32.xlu0 %v248, 64
    %v259 = vpop.permute.xlu0 %258
    %260 = vrot.lane.b32.xlu0 %v249, 64
    %v261 = vpop.permute.xlu0 %260
    %v266 = vadd.f32 %v148, %v255
    %v267 = vadd.f32 %v151, %v257
    %v268 = vadd.f32 %v154, %v259
    %v269 = vadd.f32 %v157, %v261
    %v270 = vtanh.pop %v266
    %v271 = vtanh.pop %v267
    %v272 = vtanh.pop %v268
    %v273 = vtanh.pop %v269
    %v274 = vsub.f32 1.0, %v197
    %v275 = vsub.f32 1.0, %v212
    %v276 = vsub.f32 1.0, %v227
    %v277 = vsub.f32 1.0, %v242
    %282 = vrot.lane.b32.xlu0 %v270, 96
    %v283 = vpop.permute.xlu0 %282
    %284 = vrot.lane.b32.xlu0 %v271, 96
    %v285 = vpop.permute.xlu0 %284
    %286 = vrot.lane.b32.xlu0 %v272, 96
    %v287 = vpop.permute.xlu0 %286
    %288 = vrot.lane.b32.xlu0 %v273, 96
    %v289 = vpop.permute.xlu0 %288
    %v294 = vmul.f32 %v274, %v283
    %v295 = vmul.f32 %v275, %v285
    %v296 = vmul.f32 %v276, %v287
    %v297 = vmul.f32 %v277, %v289
    %v298 = vld [vmem:[#allocation10] sm:$0x1]
    %v300 = vperm.slane %v298, 0
    %301 = vrot.lane.b32.xlu0 %v300, 32
    %v302 = vpop.permute.xlu0 %301
    %v304 = vmul.f32 %v294, %v302
    %v305 = vmul.f32 %v295, %v302
    %v306 = vmul.f32 %v296, %v302
    %v307 = vmul.f32 %v297, %v302
    %312 = vrot.lane.b32.xlu0 %v304, 96
    %v313 = vpop.permute.xlu0 %312
    %314 = vrot.lane.b32.xlu0 %v305, 96
    %v315 = vpop.permute.xlu0 %314
    %316 = vrot.lane.b32.xlu0 %v306, 96
    %v317 = vpop.permute.xlu0 %316
    %318 = vrot.lane.b32.xlu0 %v307, 96
    %v319 = vpop.permute.xlu0 %318
    %v324 = vsel %vm127, %v313, 0.0
    %325 = vadd.xlane.f32.xlu0 %v324
    %v326 = vpop.xlane.xlu0 %325
    %v327 = vsel %vm127, %v315, 0.0
    %328 = vadd.xlane.f32.xlu0 %v327
    %v329 = vpop.xlane.xlu0 %328
    %v330 = vsel %vm127, %v317, 0.0
    %331 = vadd.xlane.f32.xlu0 %v330
    %v332 = vpop.xlane.xlu0 %331
    %v333 = vsel %vm127, %v319, 0.0
    %334 = vadd.xlane.f32.xlu0 %v333
    %v335 = vpop.xlane.xlu0 %334
    %v336 = vld [vmem:[#allocation2] sm:$0x1]
    %v338 = vperm.slane %v336, 0
    %v340 = vadd.f32 %v326, %v338
    %v341 = vadd.f32 %v329, %v338
    %v342 = vadd.f32 %v332, %v338
    %v343 = vadd.f32 %v335, %v338
    %v344 = vsub.f32 %v340, %v340
    %v345 = vsub.f32 %v341, %v341
    %v346 = vsub.f32 %v342, %v342
    %v347 = vsub.f32 %v343, %v343
    %v348 = vmul.f32 %v344, 1.442695
    %v349 = vpow.pop %v348
    %v350 = vmul.f32 %v345, 1.442695
    %v351 = vpow.pop %v350
    %v352 = vmul.f32 %v346, 1.442695
    %v353 = vpow.pop %v352
    %v354 = vmul.f32 %v347, 1.442695
    %v355 = vpow.pop %v354
    %v356 = vadd.f32 %v349, 0.0
    %v357 = vadd.f32 %v351, 0.0
    %v358 = vadd.f32 %v353, 0.0
    %v359 = vadd.f32 %v355, 0.0
    %v360 = vlog2.pop %v356
    %v361 = vmul.f32 %v360, 0.6931472
    %v362 = vlog2.pop %v357
    %v363 = vmul.f32 %v362, 0.6931472
    %v364 = vlog2.pop %v358
    %v365 = vmul.f32 %v364, 0.6931472
    %v366 = vlog2.pop %v359
    %v367 = vmul.f32 %v366, 0.6931472
    %v368 = vadd.f32 %v340, %v361
    %v369 = vadd.f32 %v341, %v363
    %v370 = vadd.f32 %v342, %v365
    %v371 = vadd.f32 %v343, %v367
    %v372 = vsub.f32 %v340, %v368
    %v373 = vsub.f32 %v341, %v369
    %v374 = vsub.f32 %v342, %v370
    %v375 = vsub.f32 %v343, %v371
    %vm376 = vcmask 7168
    %377 = vst.msk [vmem:[%s13] sm:$0xff] %vm376, %v372
    %378 = vst.msk [vmem:[%s13 + $0x8] sm:$0xff] %vm376, %v373
    %379 = vst.msk [vmem:[%s13 + $0x10] sm:$0xff] %vm376, %v374
    %380 = vst.msk [vmem:[%s13 + $0x18] sm:$0xff] %vm376, %v375
    // Predicated region
    $region74: #{mtl_influencer_forward.1} parent=1 // pred_check
      _
    $region75: #{mtl_influencer_forward.1} parent=1 // pred_check_branch
      %382 = sbr.rel (0) target = $region77
    $region76: #{mtl_influencer_forward.1} parent=1 // pred_region
      _
    $region77: #{mtl_influencer_forward.1} parent=1 // pred_fallthru
      _
    // Predicated region
    $region78: #{mtl_influencer_forward.1} parent=1 // pred_check
      _
    $region79: #{mtl_influencer_forward.1} parent=1 // pred_check_branch
      %384 = sbr.rel (0) target = $region81
    $region80: #{mtl_influencer_forward.1} parent=1 // pred_region
      _
    $region81: #{mtl_influencer_forward.1} parent=1 // pred_fallthru
      _
    %385 = vsyncpa [#allocation4], 1
    %386 = vsyncpa [#allocation6], 1
    %387 = vsyncpa [#allocation9], 1

</llo_original>
